<compile_context>
chip_gen: v5e
topology: v5e:2x2
jax: 0.10.0
libtpu: 0.0.40
codegen_flags: <defaults>
</compile_context>

<pallas_src>
import functools
import math

import jax
import jax.numpy as jnp
from jax.experimental import pallas as pl
from jax.experimental.pallas import tpu as pltpu


def _round_up(x, m):
    return ((x + m - 1) // m) * m


# VMEM budgeting: target ~40 MiB of tile buffers (fits every TPU generation, including
# v7x's 64 MiB physical VMEM with headroom); pass a 48 MiB scoped limit explicitly.
_VMEM_BUDGET_BYTES = 40 * 1024 * 1024
_VMEM_LIMIT_BYTES = 48 * 1024 * 1024


def _tile_bytes(tm, tk, in_p, out_p):
    return (2 * tm * tk * 1          # int8 A mask tile, double-buffered
            + 2 * tk * in_p * 2      # bf16 H_aug tile, double-buffered
            + 2 * in_p * out_p * 2   # bf16 weight (resident; budget 2 buffers)
            + tm * in_p * 4          # f32 accumulator scratch
            + 2 * tm * out_p * 4)    # f32 output tile, double-buffered


def _pick_tiles(n_p, in_p, out_p):
    tm_cands = [c for c in (512, 256, 128) if n_p % c == 0]
    tk_cands = [c for c in (2048, 1024, 512, 256, 128) if n_p % c == 0]
    for tm in tm_cands:
        for tk in tk_cands:
            if _tile_bytes(tm, tk, in_p, out_p) <= _VMEM_BUDGET_BYTES:
                return tm, tk
    # Even the smallest tiles do not fit -> the resident weight is the culprit.
    raise ValueError(
        "GCN layer feature dims too large for resident-weight kernel; "
        "tile the out-feature axis (see TODO(synk) above).")


def gcn_layer_kernel(a_ref, h_ref, w_ref, out_ref, acc_ref, *, deg_col):
    k = pl.program_id(1)

    @pl.when(k == 0)
    def _():
        acc_ref[...] = jnp.zeros_like(acc_ref)

    # int8 0/1 mask -> bf16 (exact) -> MXU aggregation with f32 accumulation.
    mask = a_ref[...].astype(jnp.bfloat16)
    acc_ref[...] += jnp.dot(mask, h_ref[...], preferred_element_type=jnp.float32)

    @pl.when(k == pl.num_programs(1) - 1)
    def _():
        acc = acc_ref[...]
        # The ones column of H_aug rode the matmul: acc[:, deg_col] == row nnz count.
        deg = 1.0 + acc[:, deg_col:deg_col + 1]            # (tm, 1), f32
        inv = pl.reciprocal(deg, approx=True)              # EUP slot, effectively free
        scaled = (acc * inv).astype(jnp.bfloat16)
        # Weight row deg_col is zero (padding), so the degree column contributes nothing.
        out_ref[...] = jnp.dot(scaled, w_ref[...],
                               preferred_element_type=jnp.float32).astype(out_ref.dtype)


def gcn_layer(A, H, kernel):
    nodes = A.shape[0]
    in_features = H.shape[1]
    out_features = kernel.shape[0]

    # ---- wrapper-side layout plumbing (fused, single-pass; no compute hoisting) ----
    n_p = _round_up(nodes, 128)               # padded node count (rows & cols of A)
    in_p = _round_up(in_features + 1, 128)    # features + ones column, lane padded
    out_p = _round_up(out_features, 128)      # lane-dense output

    tm, tk = _pick_tiles(n_p, in_p, out_p)

    # int8 0/1 neighborhood mask; padded rows/cols are zero (no neighbors, sliced off).
    A_mask = jnp.pad((A != 0).astype(jnp.int8),
                     ((0, n_p - nodes), (0, n_p - nodes)))

    # H_aug = [H | 1 | 0 ...] in bf16: the ones column yields the neighbor count.
    H_aug = jnp.pad(
        jnp.concatenate(
            [H.astype(jnp.bfloat16), jnp.ones((nodes, 1), jnp.bfloat16)], axis=1),
        ((0, n_p - nodes), (0, in_p - (in_features + 1))))

    # Pre-transposed, zero-padded weight (in_p, out_p): no in-kernel transpose.
    # Invariant: rows >= in_features (incl. the deg column at index in_features) are zero.
    W_t = jnp.pad(kernel.T.astype(jnp.bfloat16),
                  ((0, in_p - in_features), (0, out_p - out_features)))

    grid = (n_p // tm, n_p // tk)

    out = pl.pallas_call(
        functools.partial(gcn_layer_kernel, deg_col=in_features),
        out_shape=jax.ShapeDtypeStruct((n_p, out_p), jnp.float32),
        grid_spec=pltpu.PrefetchScalarGridSpec(
            num_scalar_prefetch=0,
            grid=grid,
            in_specs=[
                pl.BlockSpec((tm, tk), lambda i, k: (i, k)),        # int8 adjacency mask
                pl.BlockSpec((tk, in_p), lambda i, k: (k, 0)),      # augmented features
                pl.BlockSpec((in_p, out_p), lambda i, k: (0, 0)),   # weight (resident)
            ],
            out_specs=pl.BlockSpec((tm, out_p), lambda i, k: (i, 0)),
            scratch_shapes=[pltpu.VMEM((tm, in_p), jnp.float32)],   # f32 accumulator
        ),
        compiler_params=pltpu.CompilerParams(
            dimension_semantics=("parallel", "arbitrary"),
            vmem_limit_bytes=_VMEM_LIMIT_BYTES),
    )(A_mask, H_aug, W_t)

    return out[:nodes, :out_features]


def reference_gcn(A, H, kernel):
    # Pure-JAX f32 reference mirroring the PyTorch loops.
    mask = (A != 0.0).astype(jnp.float32)
    agg = mask @ H
    deg = 1.0 + jnp.sum(mask, axis=1, keepdims=True)
    return (agg / deg) @ kernel.T


if __name__ == "__main__":
    nodes, in_features, out_features = 16, 32, 16

    key = jax.random.PRNGKey(0)
    k_a, k_h, k_w = jax.random.split(key, 3)

    # Sparse-ish adjacency with real zeros (so the != 0 masking matters).
    a_raw = jax.random.uniform(k_a, (nodes, nodes), dtype=jnp.float32)
    A = jnp.where(a_raw > 0.6, a_raw, 0.0)

    H = jax.random.normal(k_h, (nodes, in_features), dtype=jnp.float32)

    # kaiming_uniform_(a=sqrt(5)) on a (out_features, in_features) weight:
    # bound = sqrt(6 / ((1 + a^2) * fan_in)) = 1 / sqrt(fan_in)
    bound = 1.0 / math.sqrt(in_features)
    kernel = jax.random.uniform(
        k_w, (out_features, in_features), dtype=jnp.float32,
        minval=-bound, maxval=bound)

    out = gcn_layer(A, H, kernel)
    out = jax.block_until_ready(out)

    ref = reference_gcn(A, H, kernel)
    assert out.shape == (nodes, out_features)
    # bf16 MXU operands + approx reciprocal vs. the exact f32 reference.
    assert jnp.allclose(out, ref, atol=2e-2, rtol=2e-2), (
        float(jnp.max(jnp.abs(out - ref))))

    print("KERNEL_OK")
</pallas_src>

<mosaic_0001>
module attributes {stable_mosaic.version = 11 : i64} {
  func.func @gcn_layer_kernel(%arg0: i32, %arg1: i32, %arg2: memref<128x128xi8, #tpu.memory_space<vmem>>, %arg3: memref<128x128xbf16, #tpu.memory_space<vmem>>, %arg4: memref<128x128xbf16, #tpu.memory_space<vmem>>, %arg5: memref<128x128xf32, #tpu.memory_space<vmem>>, %arg6: memref<128x128xf32, #tpu.memory_space<vmem>>) attributes {dimension_semantics = [#tpu.dimension_semantics<parallel>, #tpu.dimension_semantics<arbitrary>], iteration_bounds = array<i64: 1, 1>, scalar_prefetch = 0 : i64, scratch_operands = 1 : i64, tpu.core_type = #tpu.core_type<tc>, window_params = [{transform_indices = @transform_0, window_bounds = array<i64: 128, 128>}, {transform_indices = @transform_1, window_bounds = array<i64: 128, 128>}, {pipeline_mode = #tpu.pipeline_mode<synchronous>, transform_indices = @transform_2, window_bounds = array<i64: 128, 128>}, {transform_indices = @transform_3, window_bounds = array<i64: 128, 128>}]} {
    %c0_i32 = arith.constant 0 : i32
    %0 = arith.cmpi eq, %arg1, %c0_i32 : i32
    %1 = arith.extui %0 : i1 to i32
    %c0_i32_0 = arith.constant 0 : i32
    %2 = arith.cmpi ne, %1, %c0_i32_0 : i32
    scf.if %2 {
      %cst_10 = arith.constant 0.000000e+00 : f32
      %13 = vector.broadcast %cst_10 : f32 to vector<128x128xf32>
      %c0_11 = arith.constant 0 : index
      %c0_12 = arith.constant 0 : index
      %14 = vector.load %arg6[%c0_11, %c0_12] : memref<128x128xf32, #tpu.memory_space<vmem>>, vector<128x128xf32>
      tpu.vector_store %arg6[%c0_11, %c0_12], %13 {strides = array<i32>} : memref<128x128xf32, #tpu.memory_space<vmem>>, vector<128x128xf32>,
    } else {
    }
    %c0 = arith.constant 0 : index
    %c0_1 = arith.constant 0 : index
    %3 = vector.load %arg2[%c0, %c0_1] : memref<128x128xi8, #tpu.memory_space<vmem>>, vector<128x128xi8>
    %4 = arith.sitofp %3 : vector<128x128xi8> to vector<128x128xbf16>
    %c0_2 = arith.constant 0 : index
    %c0_3 = arith.constant 0 : index
    %5 = vector.load %arg6[%c0_2, %c0_3] : memref<128x128xf32, #tpu.memory_space<vmem>>, vector<128x128xf32>
    %c0_4 = arith.constant 0 : index
    %c0_5 = arith.constant 0 : index
    %6 = vector.load %arg3[%c0_4, %c0_5] : memref<128x128xbf16, #tpu.memory_space<vmem>>, vector<128x128xbf16>
    %cst = arith.constant dense<0.000000e+00> : vector<128x128xf32>
    %7 = tpu.matmul %4, %6, %cst {dimension_numbers = #tpu.dot_dimension_numbers<[1], [0], [0], [1], [0, 0, 1, 1], [], []>} : vector<128x128xbf16>, vector<128x128xbf16>, vector<128x128xf32> -> vector<128x128xf32>
    %8 = arith.addf %5, %7 : vector<128x128xf32>
    %c0_6 = arith.constant 0 : index
    %c0_7 = arith.constant 0 : index
    %9 = vector.load %arg6[%c0_6, %c0_7] : memref<128x128xf32, #tpu.memory_space<vmem>>, vector<128x128xf32>
    tpu.vector_store %arg6[%c0_6, %c0_7], %8 {strides = array<i32>} : memref<128x128xf32, #tpu.memory_space<vmem>>, vector<128x128xf32>,
    %c0_i32_8 = arith.constant 0 : i32
    %10 = arith.cmpi eq, %arg1, %c0_i32_8 : i32
    %11 = arith.extui %10 : i1 to i32
    %c0_i32_9 = arith.constant 0 : i32
    %12 = arith.cmpi ne, %11, %c0_i32_9 : i32
    scf.if %12 {
      %c0_10 = arith.constant 0 : index
      %c0_11 = arith.constant 0 : index
      %13 = vector.load %arg6[%c0_10, %c0_11] : memref<128x128xf32, #tpu.memory_space<vmem>>, vector<128x128xf32>
      %14 = vector.extract_strided_slice %13 {offsets = [0, 32], sizes = [128, 1], strides = [1, 1]} : vector<128x128xf32> to vector<128x1xf32>
      %cst_12 = arith.constant 1.000000e+00 : f32
      %15 = vector.broadcast %cst_12 : f32 to vector<128x1xf32>
      %16 = arith.addf %15, %14 : vector<128x1xf32>
      %17 = tpu.reciprocal %16 {approx = true} : vector<128x1xf32> -> vector<128x1xf32>
      %18 = vector.broadcast %17 : vector<128x1xf32> to vector<128x128xf32>
      %19 = arith.mulf %13, %18 : vector<128x128xf32>
      %20 = arith.truncf %19 : vector<128x128xf32> to vector<128x128xbf16>
      %c0_13 = arith.constant 0 : index
      %c0_14 = arith.constant 0 : index
      %21 = vector.load %arg4[%c0_13, %c0_14] : memref<128x128xbf16, #tpu.memory_space<vmem>>, vector<128x128xbf16>
      %cst_15 = arith.constant dense<0.000000e+00> : vector<128x128xf32>
      %22 = tpu.matmul %20, %21, %cst_15 {dimension_numbers = #tpu.dot_dimension_numbers<[1], [0], [0], [1], [0, 0, 1, 1], [], []>} : vector<128x128xbf16>, vector<128x128xbf16>, vector<128x128xf32> -> vector<128x128xf32>
      %c0_16 = arith.constant 0 : index
      %c0_17 = arith.constant 0 : index
      %23 = vector.load %arg5[%c0_16, %c0_17] : memref<128x128xf32, #tpu.memory_space<vmem>>, vector<128x128xf32>
      tpu.vector_store %arg5[%c0_16, %c0_17], %22 {strides = array<i32>} : memref<128x128xf32, #tpu.memory_space<vmem>>, vector<128x128xf32>,
    } else {
    }
    return
  }
  func.func @transform_0(%arg0: i32, %arg1: i32) -> (i32, i32) {
    %c0_i32 = arith.constant 0 : i32
    return %arg0, %arg1 : i32, i32
  }
  func.func @transform_1(%arg0: i32, %arg1: i32) -> (i32, i32) {
    %c0_i32 = arith.constant 0 : i32
    %c0_i32_0 = arith.constant 0 : i32
    return %arg1, %c0_i32 : i32, i32
  }
  func.func @transform_2(%arg0: i32, %arg1: i32) -> (i32, i32) {
    %c0_i32 = arith.constant 0 : i32
    %c0_i32_0 = arith.constant 0 : i32
    %c0_i32_1 = arith.constant 0 : i32
    return %c0_i32, %c0_i32_0 : i32, i32
  }
  func.func @transform_3(%arg0: i32, %arg1: i32) -> (i32, i32) {
    %c0_i32 = arith.constant 0 : i32
    %c0_i32_0 = arith.constant 0 : i32
    return %arg0, %c0_i32 : i32, i32
  }
}

</mosaic_0001>

<llo_original>
// kernel: tpu_custom_call.1
$region0: #{tpu_custom_call.1}
  #allocation0 [shape = 'u32[]', space=smem, size = 0x4, offset = 0x4, fixed_abs, tag = 'smem constant byte address 0x4 - core index']
  #allocation1 [shape = 'u32[72,128]{1,0:T(1,128)}', space=vmem, size = 0x9000, scoped, tag = 'internal scratch']
  #allocation2 [shape = 'f32[128,128]{1,0:T(8,128)}', space=vmem, size = 0x10000, scoped, tag = 'scratch operand']
  %s0 = inlined_call_operand.hbm [shape: s8[128,128], index: 0, kind: input, shape index: {}]
  %s1 = inlined_call_operand.hbm [shape: bf16[128,128], index: 1, kind: input, shape index: {}]
  %s2 = inlined_call_operand.hbm [shape: bf16[128,128], index: 2, kind: input, shape index: {}]
  %s3 = inlined_call_operand.hbm [shape: f32[128,128], index: 3, kind: output, shape index: {}]
  %s4 = sld [smem:[#allocation0]]
  $region42: #{tpu_custom_call.1} parent=0
    _
  %s6 = ssub.s32 1, %s4
  %s7 = scalar_select 0, %s6, %s4
  $region1: #{tpu_custom_call.1} parent=0
    #allocation3 [shape = 'u8[16384]{0}', space=vmem, size = 0x4000, scoped, tag = 'input window, operand 0, single buffered']
    #allocation4 [shape = 's32[1]{0}', space=sflag, size = 0x4, scoped, tag = 'scoped memory for tpu_custom_call.1']
    #allocation5 [shape = 's32[1]{0}', space=sflag, size = 0x4, scoped, tag = 'scoped memory for tpu_custom_call.1']
    #allocation6 [shape = 'u8[32768]{0}', space=vmem, size = 0x8000, scoped, tag = 'input window, operand 1, single buffered']
    #allocation7 [shape = 's32[1]{0}', space=sflag, size = 0x4, scoped, tag = 'scoped memory for tpu_custom_call.1']
    #allocation8 [shape = 'u8[32768]{0}', space=vmem, size = 0x8000, scoped, tag = 'input window, operand 2, single buffered']
    #allocation9 [shape = 'u8[65536]{0}', space=vmem, size = 0x10000, scoped, tag = 'output window, operand 0, single buffered']
    %8 = vsyncpa [#allocation4], 0
    %9 = vsyncpa [#allocation7], 0
    %10 = vsyncpa [#allocation5], 0
    // Predicated region
    $region2: #{tpu_custom_call.1} parent=1 // pred_check
      _
    $region3: #{tpu_custom_call.1} parent=1 // pred_check_branch
      %12 = sbr.rel (0) target = $region5
    $region4: #{tpu_custom_call.1} parent=1 // pred_region
      %14 = vsyncadd [#allocation4], 0
      %s15 = sshll.u32 %s0, 4
      %s16 = int_to_ptr.hbm [resolvable:$true] %s15
      %s17 = sshll.u32 [#allocation3], 4
      %s18 = int_to_ptr.vmem [resolvable:$true] %s17
      %23 = dma.hbm_to_vmem [thread:$0]  %s16, 512, %s18, [#allocation4], 128, 128, 8
    $region5: #{tpu_custom_call.1} parent=1 // pred_fallthru
      _
    // Predicated region
    $region6: #{tpu_custom_call.1} parent=1 // pred_check
      _
    $region7: #{tpu_custom_call.1} parent=1 // pred_check_branch
      %25 = sbr.rel (0) target = $region9
    $region8: #{tpu_custom_call.1} parent=1 // pred_region
      %27 = vsyncadd [#allocation7], 0
      %s28 = sshll.u32 %s1, 4
      %s29 = int_to_ptr.hbm [resolvable:$true] %s28
      %s30 = sshll.u32 [#allocation6], 4
      %s31 = int_to_ptr.vmem [resolvable:$true] %s30
      %36 = dma.hbm_to_vmem [thread:$0]  %s29, 1024, %s31, [#allocation7], 64, 64, 4
    $region9: #{tpu_custom_call.1} parent=1 // pred_fallthru
      _
    // Predicated region
    $region10: #{tpu_custom_call.1} parent=1 // pred_check
      _
    $region11: #{tpu_custom_call.1} parent=1 // pred_check_branch
      %38 = sbr.rel (0) target = $region13
    $region12: #{tpu_custom_call.1} parent=1 // pred_region
      %40 = vsyncadd [#allocation7], 0
      %s41 = sshll.u32 %s2, 4
      %s42 = int_to_ptr.hbm [resolvable:$true] %s41
      %s43 = sshll.u32 [#allocation8], 4
      %s44 = int_to_ptr.vmem [resolvable:$true] %s43
      %49 = dma.hbm_to_vmem [thread:$0]  %s42, 1024, %s44, [#allocation7], 64, 64, 4
    $region13: #{tpu_custom_call.1} parent=1 // pred_fallthru
      _
    // Predicated region
    $region14: #{tpu_custom_call.1} parent=1 // pred_check
      _
    $region15: #{tpu_custom_call.1} parent=1 // pred_check_branch
      %51 = sbr.rel (0) target = $region17
    $region16: #{tpu_custom_call.1} parent=1 // pred_region
      %53 = dma.done [#allocation4], 512
    $region17: #{tpu_custom_call.1} parent=1 // pred_fallthru
      _
    // Predicated region
    $region18: #{tpu_custom_call.1} parent=1 // pred_check
      _
    $region19: #{tpu_custom_call.1} parent=1 // pred_check_branch
      %55 = sbr.rel (0) target = $region21
    $region20: #{tpu_custom_call.1} parent=1 // pred_region
      %57 = dma.done [#allocation7], 1024
    $region21: #{tpu_custom_call.1} parent=1 // pred_fallthru
      _
    // Predicated region
    $region22: #{tpu_custom_call.1} parent=1 // pred_check
      _
    $region23: #{tpu_custom_call.1} parent=1 // pred_check_branch
      %59 = sbr.rel (0) target = $region25
    $region24: #{tpu_custom_call.1} parent=1 // pred_region
      %61 = dma.done [#allocation7], 1024
    $region25: #{tpu_custom_call.1} parent=1 // pred_fallthru
      _
    %p62 = scmp.eq.s32.totalorder 0, 0
    // Predicated region
    $region26: #{tpu_custom_call.1} parent=1 // pred_check
      %p63 = pneg %p62
    $region27: #{tpu_custom_call.1} parent=1 // pred_check_branch
      %65 = sbr.rel (%p63) target = $region29
    $region28: #{tpu_custom_call.1} parent=1 // pred_region
      %66 = vst [vmem:[#allocation2] sm:$0xff] 0.0
      %67 = vst [vmem:[#allocation2 + $0x8] sm:$0xff] 0.0
      %68 = vst [vmem:[#allocation2 + $0x10] sm:$0xff] 0.0
      %69 = vst [vmem:[#allocation2 + $0x18] sm:$0xff] 0.0
      %70 = vst [vmem:[#allocation2 + $0x20] sm:$0xff] 0.0
      %71 = vst [vmem:[#allocation2 + $0x28] sm:$0xff] 0.0
      %72 = vst [vmem:[#allocation2 + $0x30] sm:$0xff] 0.0
      %73 = vst [vmem:[#allocation2 + $0x38] sm:$0xff] 0.0
      %74 = vst [vmem:[#allocation2 + $0x40] sm:$0xff] 0.0
      %75 = vst [vmem:[#allocation2 + $0x48] sm:$0xff] 0.0
      %76 = vst [vmem:[#allocation2 + $0x50] sm:$0xff] 0.0
      %77 = vst [vmem:[#allocation2 + $0x58] sm:$0xff] 0.0
      %78 = vst [vmem:[#allocation2 + $0x60] sm:$0xff] 0.0
      %79 = vst [vmem:[#allocation2 + $0x68] sm:$0xff] 0.0
      %80 = vst [vmem:[#allocation2 + $0x70] sm:$0xff] 0.0
      %81 = vst [vmem:[#allocation2 + $0x78] sm:$0xff] 0.0
    $region29: #{tpu_custom_call.1} parent=1 // pred_fallthru
      _
    %v82 = vld [vmem:[#allocation3] sm:$0xff]
    %v83 = vld [vmem:[#allocation3 + $0x8] sm:$0xff]
    %v84 = vld [vmem:[#allocation3 + $0x10] sm:$0xff]
    %v85 = vld [vmem:[#allocation3 + $0x18] sm:$0xff]
    %v86 = vunpack.c.0.s8 %v82
    %v87 = vunpack.c.1.s8 %v82
    %v88 = vunpack.c.2.s8 %v82
    %v89 = vunpack.c.3.s8 %v82
    %v90 = vunpack.c.0.s8 %v83
    %v91 = vunpack.c.1.s8 %v83
    %v92 = vunpack.c.2.s8 %v83
    %v93 = vunpack.c.3.s8 %v83
    %v94 = vunpack.c.0.s8 %v84
    %v95 = vunpack.c.1.s8 %v84
    %v96 = vunpack.c.2.s8 %v84
    %v97 = vunpack.c.3.s8 %v84
    %v98 = vunpack.c.0.s8 %v85
    %v99 = vunpack.c.1.s8 %v85
    %v100 = vunpack.c.2.s8 %v85
    %v101 = vunpack.c.3.s8 %v85
    %v102 = vcvt.s32.f32 %v86
    %v103 = vcvt.s32.f32 %v87
    %v104 = vcvt.s32.f32 %v88
    %v105 = vcvt.s32.f32 %v89
    %v106 = vcvt.s32.f32 %v90
    %v107 = vcvt.s32.f32 %v91
    %v108 = vcvt.s32.f32 %v92
    %v109 = vcvt.s32.f32 %v93
    %v110 = vcvt.s32.f32 %v94
    %v111 = vcvt.s32.f32 %v95
    %v112 = vcvt.s32.f32 %v96
    %v113 = vcvt.s32.f32 %v97
    %v114 = vcvt.s32.f32 %v98
    %v115 = vcvt.s32.f32 %v99
    %v116 = vcvt.s32.f32 %v100
    %v117 = vcvt.s32.f32 %v101
    %v118 = vpack.c.bf16 %v103, %v102
    %v119 = vpack.c.bf16 %v105, %v104
    %v120 = vpack.c.bf16 %v107, %v106
    %v121 = vpack.c.bf16 %v109, %v108
    %v122 = vpack.c.bf16 %v111, %v110
    %v123 = vpack.c.bf16 %v113, %v112
    %v124 = vpack.c.bf16 %v115, %v114
    %v125 = vpack.c.bf16 %v117, %v116
    %v126 = vld [vmem:[#allocation2] sm:$0xff]
    %v127 = vld [vmem:[#allocation2 + $0x8] sm:$0xff]
    %v128 = vld [vmem:[#allocation2 + $0x10] sm:$0xff]
    %v129 = vld [vmem:[#allocation2 + $0x18] sm:$0xff]
    %v130 = vld [vmem:[#allocation2 + $0x20] sm:$0xff]
    %v131 = vld [vmem:[#allocation2 + $0x28] sm:$0xff]
    %v132 = vld [vmem:[#allocation2 + $0x30] sm:$0xff]
    %v133 = vld [vmem:[#allocation2 + $0x38] sm:$0xff]
    %v134 = vld [vmem:[#allocation2 + $0x40] sm:$0xff]
    %v135 = vld [vmem:[#allocation2 + $0x48] sm:$0xff]
    %v136 = vld [vmem:[#allocation2 + $0x50] sm:$0xff]
    %v137 = vld [vmem:[#allocation2 + $0x58] sm:$0xff]
    %v138 = vld [vmem:[#allocation2 + $0x60] sm:$0xff]
    %v139 = vld [vmem:[#allocation2 + $0x68] sm:$0xff]
    %v140 = vld [vmem:[#allocation2 + $0x70] sm:$0xff]
    %v141 = vld [vmem:[#allocation2 + $0x78] sm:$0xff]
    %v142 = vld [vmem:[#allocation6] sm:$0xf]
    %v143 = vld [vmem:[#allocation6 + $0x4] sm:$0xf]
    %v144 = vld [vmem:[#allocation6 + $0x8] sm:$0xf]
    %v145 = vld [vmem:[#allocation6 + $0xc] sm:$0xf]
    %v146 = vld [vmem:[#allocation6 + $0x10] sm:$0xf]
    %v147 = vld [vmem:[#allocation6 + $0x14] sm:$0xf]
    %v148 = vld [vmem:[#allocation6 + $0x18] sm:$0xf]
    %v149 = vld [vmem:[#allocation6 + $0x1c] sm:$0xf]
    %v150 = vld [vmem:[#allocation6 + $0x20] sm:$0xf]
    %v151 = vld [vmem:[#allocation6 + $0x24] sm:$0xf]
    %v152 = vld [vmem:[#allocation6 + $0x28] sm:$0xf]
    %v153 = vld [vmem:[#allocation6 + $0x2c] sm:$0xf]
    %v154 = vld [vmem:[#allocation6 + $0x30] sm:$0xf]
    %v155 = vld [vmem:[#allocation6 + $0x34] sm:$0xf]
    %v156 = vld [vmem:[#allocation6 + $0x38] sm:$0xf]
    %v157 = vld [vmem:[#allocation6 + $0x3c] sm:$0xf]
    %v174 = vunpack.c.l.b16 %v142
    %v175 = vunpack.c.l.b16 %v143
    %v176 = vunpack.c.l.b16 %v144
    %v177 = vunpack.c.l.b16 %v145
    %v178 = vunpack.c.l.b16 %v146
    %v179 = vunpack.c.l.b16 %v147
    %v180 = vunpack.c.l.b16 %v148
    %v181 = vunpack.c.l.b16 %v149
    %v182 = vunpack.c.l.b16 %v150
    %v183 = vunpack.c.l.b16 %v151
    %v184 = vunpack.c.l.b16 %v152
    %v185 = vunpack.c.l.b16 %v153
    %v186 = vunpack.c.l.b16 %v154
    %v187 = vunpack.c.l.b16 %v155
    %v188 = vunpack.c.l.b16 %v156
    %v189 = vunpack.c.l.b16 %v157
    %v190 = vpack.c.b16 %v175, %v174
    %v191 = vpack.c.b16 %v177, %v176
    %v192 = vpack.c.b16 %v179, %v178
    %v193 = vpack.c.b16 %v181, %v180
    %v194 = vpack.c.b16 %v183, %v182
    %v195 = vpack.c.b16 %v185, %v184
    %v196 = vpack.c.b16 %v187, %v186
    %v197 = vpack.c.b16 %v189, %v188
    %206 = vmatpush.bf16.msra.mxu0 %v197
    %207 = vmatpush.bf16.msra.mxu0 %v196
    %208 = vmatpush.bf16.msra.mxu0 %v195
    %209 = vmatpush.bf16.msra.mxu0 %v194
    %210 = vmatpush.bf16.msra.mxu0 %v193
    %211 = vmatpush.bf16.msra.mxu0 %v192
    %212 = vmatpush.bf16.msra.mxu0 %v191
    %213 = vmatpush.bf16.msra.mxu0 %v190
    %214 = vmatmul.bf16.gmra.mxu0 %v118
    %v215 = vpop.f32.mrf.mxu0
    %v216 = vadd.f32 0.0, %v215
    %v217 = vpop.f32.mrf.mxu0
    %v218 = vadd.f32 0.0, %v217
    %219 = vmatmul.bf16.gmra.mxu0 %v119
    %v220 = vpop.f32.mrf.mxu0
    %v221 = vadd.f32 0.0, %v220
    %v222 = vpop.f32.mrf.mxu0
    %v223 = vadd.f32 0.0, %v222
    %224 = vmatmul.bf16.gmra.mxu0 %v120
    %v225 = vpop.f32.mrf.mxu0
    %v226 = vadd.f32 0.0, %v225
    %v227 = vpop.f32.mrf.mxu0
    %v228 = vadd.f32 0.0, %v227
    %229 = vmatmul.bf16.gmra.mxu0 %v121
    %v230 = vpop.f32.mrf.mxu0
    %v231 = vadd.f32 0.0, %v230
    %v232 = vpop.f32.mrf.mxu0
    %v233 = vadd.f32 0.0, %v232
    %234 = vmatmul.bf16.gmra.mxu0 %v122
    %v235 = vpop.f32.mrf.mxu0
    %v236 = vadd.f32 0.0, %v235
    %v237 = vpop.f32.mrf.mxu0
    %v238 = vadd.f32 0.0, %v237
    %239 = vmatmul.bf16.gmra.mxu0 %v123
    %v240 = vpop.f32.mrf.mxu0
    %v241 = vadd.f32 0.0, %v240
    %v242 = vpop.f32.mrf.mxu0
    %v243 = vadd.f32 0.0, %v242
    %244 = vmatmul.bf16.gmra.mxu0 %v124
    %v245 = vpop.f32.mrf.mxu0
    %v246 = vadd.f32 0.0, %v245
    %v247 = vpop.f32.mrf.mxu0
    %v248 = vadd.f32 0.0, %v247
    %249 = vmatmul.bf16.gmra.mxu0 %v125
    %v250 = vpop.f32.mrf.mxu0
    %v251 = vadd.f32 0.0, %v250
    %v252 = vpop.f32.mrf.mxu0
    %v253 = vadd.f32 0.0, %v252
    %254 = vdwg.mxu0
    %v255 = vadd.f32 %v126, %v216
    %v256 = vadd.f32 %v127, %v218
    %v257 = vadd.f32 %v128, %v221
    %v258 = vadd.f32 %v129, %v223
    %v259 = vadd.f32 %v130, %v226
    %v260 = vadd.f32 %v131, %v228
    %v261 = vadd.f32 %v132, %v231
    %v262 = vadd.f32 %v133, %v233
    %v263 = vadd.f32 %v134, %v236
    %v264 = vadd.f32 %v135, %v238
    %v265 = vadd.f32 %v136, %v241
    %v266 = vadd.f32 %v137, %v243
    %v267 = vadd.f32 %v138, %v246
    %v268 = vadd.f32 %v139, %v248
    %v269 = vadd.f32 %v140, %v251
    %v270 = vadd.f32 %v141, %v253
    %271 = vst [vmem:[#allocation2] sm:$0xff] %v255
    %272 = vst [vmem:[#allocation2 + $0x8] sm:$0xff] %v256
    %273 = vst [vmem:[#allocation2 + $0x10] sm:$0xff] %v257
    %274 = vst [vmem:[#allocation2 + $0x18] sm:$0xff] %v258
    %275 = vst [vmem:[#allocation2 + $0x20] sm:$0xff] %v259
    %276 = vst [vmem:[#allocation2 + $0x28] sm:$0xff] %v260
    %277 = vst [vmem:[#allocation2 + $0x30] sm:$0xff] %v261
    %278 = vst [vmem:[#allocation2 + $0x38] sm:$0xff] %v262
    %279 = vst [vmem:[#allocation2 + $0x40] sm:$0xff] %v263
    %280 = vst [vmem:[#allocation2 + $0x48] sm:$0xff] %v264
    %281 = vst [vmem:[#allocation2 + $0x50] sm:$0xff] %v265
    %282 = vst [vmem:[#allocation2 + $0x58] sm:$0xff] %v266
    %283 = vst [vmem:[#allocation2 + $0x60] sm:$0xff] %v267
    %284 = vst [vmem:[#allocation2 + $0x68] sm:$0xff] %v268
    %285 = vst [vmem:[#allocation2 + $0x70] sm:$0xff] %v269
    %286 = vst [vmem:[#allocation2 + $0x78] sm:$0xff] %v270
    // Predicated region
    $region30: #{tpu_custom_call.1} parent=1 // pred_check
      %p287 = pneg %p62
    $region31: #{tpu_custom_call.1} parent=1 // pred_check_branch
      %289 = sbr.rel (%p287) target = $region33
    $region32: #{tpu_custom_call.1} parent=1 // pred_region
      %v290 = vld [vmem:[#allocation2] sm:$0xff]
      %v291 = vld [vmem:[#allocation2 + $0x8] sm:$0xff]
      %v292 = vld [vmem:[#allocation2 + $0x10] sm:$0xff]
      %v293 = vld [vmem:[#allocation2 + $0x18] sm:$0xff]
      %v294 = vld [vmem:[#allocation2 + $0x20] sm:$0xff]
      %v295 = vld [vmem:[#allocation2 + $0x28] sm:$0xff]
      %v296 = vld [vmem:[#allocation2 + $0x30] sm:$0xff]
      %v297 = vld [vmem:[#allocation2 + $0x38] sm:$0xff]
      %v298 = vld [vmem:[#allocation2 + $0x40] sm:$0xff]
      %v299 = vld [vmem:[#allocation2 + $0x48] sm:$0xff]
      %v300 = vld [vmem:[#allocation2 + $0x50] sm:$0xff]
      %v301 = vld [vmem:[#allocation2 + $0x58] sm:$0xff]
      %v302 = vld [vmem:[#allocation2 + $0x60] sm:$0xff]
      %v303 = vld [vmem:[#allocation2 + $0x68] sm:$0xff]
      %v304 = vld [vmem:[#allocation2 + $0x70] sm:$0xff]
      %v305 = vld [vmem:[#allocation2 + $0x78] sm:$0xff]
      %v306 = vadd.f32 %v290, 1.0
      %v307 = vadd.f32 %v291, 1.0
      %v308 = vadd.f32 %v292, 1.0
      %v309 = vadd.f32 %v293, 1.0
      %v310 = vadd.f32 %v294, 1.0
      %v311 = vadd.f32 %v295, 1.0
      %v312 = vadd.f32 %v296, 1.0
      %v313 = vadd.f32 %v297, 1.0
      %v314 = vadd.f32 %v298, 1.0
      %v315 = vadd.f32 %v299, 1.0
      %v316 = vadd.f32 %v300, 1.0
      %v317 = vadd.f32 %v301, 1.0
      %v318 = vadd.f32 %v302, 1.0
      %v319 = vadd.f32 %v303, 1.0
      %v320 = vadd.f32 %v304, 1.0
      %v321 = vadd.f32 %v305, 1.0
      %v322 = vrcp.pop %v306
      %v323 = vrcp.pop %v307
      %v324 = vrcp.pop %v308
      %v325 = vrcp.pop %v309
      %v326 = vrcp.pop %v310
      %v327 = vrcp.pop %v311
      %v328 = vrcp.pop %v312
      %v329 = vrcp.pop %v313
      %v330 = vrcp.pop %v314
      %v331 = vrcp.pop %v315
      %v332 = vrcp.pop %v316
      %v333 = vrcp.pop %v317
      %v334 = vrcp.pop %v318
      %v335 = vrcp.pop %v319
      %v336 = vrcp.pop %v320
      %v337 = vrcp.pop %v321
      %339 = vset.pattern.permute.xlu0 32
      %340 = vperm.xlu0 %339, %v322
      %v341 = vpop.permute.xlu0 %340
      %344 = vset.pattern.permute.xlu0 32
      %345 = vperm.xlu0 %344, %v323
      %v346 = vpop.permute.xlu0 %345
      %349 = vset.pattern.permute.xlu0 32
      %350 = vperm.xlu0 %349, %v324
      %v351 = vpop.permute.xlu0 %350
      %354 = vset.pattern.permute.xlu0 32
      %355 = vperm.xlu0 %354, %v325
      %v356 = vpop.permute.xlu0 %355
      %359 = vset.pattern.permute.xlu0 32
      %360 = vperm.xlu0 %359, %v326
      %v361 = vpop.permute.xlu0 %360
      %364 = vset.pattern.permute.xlu0 32
      %365 = vperm.xlu0 %364, %v327
      %v366 = vpop.permute.xlu0 %365
      %369 = vset.pattern.permute.xlu0 32
      %370 = vperm.xlu0 %369, %v328
      %v371 = vpop.permute.xlu0 %370
      %374 = vset.pattern.permute.xlu0 32
      %375 = vperm.xlu0 %374, %v329
      %v376 = vpop.permute.xlu0 %375
      %379 = vset.pattern.permute.xlu0 32
      %380 = vperm.xlu0 %379, %v330
      %v381 = vpop.permute.xlu0 %380
      %384 = vset.pattern.permute.xlu0 32
      %385 = vperm.xlu0 %384, %v331
      %v386 = vpop.permute.xlu0 %385
      %389 = vset.pattern.permute.xlu0 32
      %390 = vperm.xlu0 %389, %v332
      %v391 = vpop.permute.xlu0 %390
      %394 = vset.pattern.permute.xlu0 32
      %395 = vperm.xlu0 %394, %v333
      %v396 = vpop.permute.xlu0 %395
      %399 = vset.pattern.permute.xlu0 32
      %400 = vperm.xlu0 %399, %v334
      %v401 = vpop.permute.xlu0 %400
      %404 = vset.pattern.permute.xlu0 32
      %405 = vperm.xlu0 %404, %v335
      %v406 = vpop.permute.xlu0 %405
      %409 = vset.pattern.permute.xlu0 32
      %410 = vperm.xlu0 %409, %v336
      %v411 = vpop.permute.xlu0 %410
      %414 = vset.pattern.permute.xlu0 32
      %415 = vperm.xlu0 %414, %v337
      %v416 = vpop.permute.xlu0 %415
      %v418 = vmul.f32 %v290, %v341
      %v419 = vmul.f32 %v291, %v346
      %v420 = vmul.f32 %v292, %v351
      %v421 = vmul.f32 %v293, %v356
      %v422 = vmul.f32 %v294, %v361
      %v423 = vmul.f32 %v295, %v366
      %v424 = vmul.f32 %v296, %v371
      %v425 = vmul.f32 %v297, %v376
      %v426 = vmul.f32 %v298, %v381
      %v427 = vmul.f32 %v299, %v386
      %v428 = vmul.f32 %v300, %v391
      %v429 = vmul.f32 %v301, %v396
      %v430 = vmul.f32 %v302, %v401
      %v431 = vmul.f32 %v303, %v406
      %v432 = vmul.f32 %v304, %v411
      %v433 = vmul.f32 %v305, %v416
      %v434 = vpack.c.bf16 %v419, %v418
      %v435 = vpack.c.bf16 %v421, %v420
      %v436 = vpack.c.bf16 %v423, %v422
      %v437 = vpack.c.bf16 %v425, %v424
      %v438 = vpack.c.bf16 %v427, %v426
      %v439 = vpack.c.bf16 %v429, %v428
      %v440 = vpack.c.bf16 %v431, %v430
      %v441 = vpack.c.bf16 %v433, %v432
      %v442 = vld [vmem:[#allocation8] sm:$0xf]
      %v443 = vld [vmem:[#allocation8 + $0x4] sm:$0xf]
      %v444 = vld [vmem:[#allocation8 + $0x8] sm:$0xf]
      %v445 = vld [vmem:[#allocation8 + $0xc] sm:$0xf]
      %v446 = vld [vmem:[#allocation8 + $0x10] sm:$0xf]
      %v447 = vld [vmem:[#allocation8 + $0x14] sm:$0xf]
      %v448 = vld [vmem:[#allocation8 + $0x18] sm:$0xf]
      %v449 = vld [vmem:[#allocation8 + $0x1c] sm:$0xf]
      %v450 = vld [vmem:[#allocation8 + $0x20] sm:$0xf]
      %v451 = vld [vmem:[#allocation8 + $0x24] sm:$0xf]
      %v452 = vld [vmem:[#allocation8 + $0x28] sm:$0xf]
      %v453 = vld [vmem:[#allocation8 + $0x2c] sm:$0xf]
      %v454 = vld [vmem:[#allocation8 + $0x30] sm:$0xf]
      %v455 = vld [vmem:[#allocation8 + $0x34] sm:$0xf]
      %v456 = vld [vmem:[#allocation8 + $0x38] sm:$0xf]
      %v457 = vld [vmem:[#allocation8 + $0x3c] sm:$0xf]
      %v474 = vunpack.c.l.b16 %v442
      %v475 = vunpack.c.l.b16 %v443
      %v476 = vunpack.c.l.b16 %v444
      %v477 = vunpack.c.l.b16 %v445
      %v478 = vunpack.c.l.b16 %v446
      %v479 = vunpack.c.l.b16 %v447
      %v480 = vunpack.c.l.b16 %v448
      %v481 = vunpack.c.l.b16 %v449
      %v482 = vunpack.c.l.b16 %v450
      %v483 = vunpack.c.l.b16 %v451
      %v484 = vunpack.c.l.b16 %v452
      %v485 = vunpack.c.l.b16 %v453
      %v486 = vunpack.c.l.b16 %v454
      %v487 = vunpack.c.l.b16 %v455
      %v488 = vunpack.c.l.b16 %v456
      %v489 = vunpack.c.l.b16 %v457
      %v490 = vpack.c.b16 %v475, %v474
      %v491 = vpack.c.b16 %v477, %v476
      %v492 = vpack.c.b16 %v479, %v478
      %v493 = vpack.c.b16 %v481, %v480
      %v494 = vpack.c.b16 %v483, %v482
      %v495 = vpack.c.b16 %v485, %v484
      %v496 = vpack.c.b16 %v487, %v486
      %v497 = vpack.c.b16 %v489, %v488
      %506 = vmatpush.bf16.msra.mxu0 %v497
      %507 = vmatpush.bf16.msra.mxu0 %v496
      %508 = vmatpush.bf16.msra.mxu0 %v495
      %509 = vmatpush.bf16.msra.mxu0 %v494
      %510 = vmatpush.bf16.msra.mxu0 %v493
      %511 = vmatpush.bf16.msra.mxu0 %v492
      %512 = vmatpush.bf16.msra.mxu0 %v491
      %513 = vmatpush.bf16.msra.mxu0 %v490
      %514 = vmatmul.bf16.gmra.mxu0 %v434
      %v515 = vpop.f32.mrf.mxu0
      %v516 = vadd.f32 0.0, %v515
      %v517 = vpop.f32.mrf.mxu0
      %v518 = vadd.f32 0.0, %v517
      %519 = vmatmul.bf16.gmra.mxu0 %v435
      %v520 = vpop.f32.mrf.mxu0
      %v521 = vadd.f32 0.0, %v520
      %v522 = vpop.f32.mrf.mxu0
      %v523 = vadd.f32 0.0, %v522
      %524 = vmatmul.bf16.gmra.mxu0 %v436
      %v525 = vpop.f32.mrf.mxu0
      %v526 = vadd.f32 0.0, %v525
      %v527 = vpop.f32.mrf.mxu0
      %v528 = vadd.f32 0.0, %v527
      %529 = vmatmul.bf16.gmra.mxu0 %v437
      %v530 = vpop.f32.mrf.mxu0
      %v531 = vadd.f32 0.0, %v530
      %v532 = vpop.f32.mrf.mxu0
      %v533 = vadd.f32 0.0, %v532
      %534 = vmatmul.bf16.gmra.mxu0 %v438
      %v535 = vpop.f32.mrf.mxu0
      %v536 = vadd.f32 0.0, %v535
      %v537 = vpop.f32.mrf.mxu0
      %v538 = vadd.f32 0.0, %v537
      %539 = vmatmul.bf16.gmra.mxu0 %v439
      %v540 = vpop.f32.mrf.mxu0
      %v541 = vadd.f32 0.0, %v540
      %v542 = vpop.f32.mrf.mxu0
      %v543 = vadd.f32 0.0, %v542
      %544 = vmatmul.bf16.gmra.mxu0 %v440
      %v545 = vpop.f32.mrf.mxu0
      %v546 = vadd.f32 0.0, %v545
      %v547 = vpop.f32.mrf.mxu0
      %v548 = vadd.f32 0.0, %v547
      %549 = vmatmul.bf16.gmra.mxu0 %v441
      %v550 = vpop.f32.mrf.mxu0
      %v551 = vadd.f32 0.0, %v550
      %v552 = vpop.f32.mrf.mxu0
      %v553 = vadd.f32 0.0, %v552
      %554 = vdwg.mxu0
      %555 = vst [vmem:[#allocation9] sm:$0xff] %v516
      %556 = vst [vmem:[#allocation9 + $0x8] sm:$0xff] %v518
      %557 = vst [vmem:[#allocation9 + $0x10] sm:$0xff] %v521
      %558 = vst [vmem:[#allocation9 + $0x18] sm:$0xff] %v523
      %559 = vst [vmem:[#allocation9 + $0x20] sm:$0xff] %v526
      %560 = vst [vmem:[#allocation9 + $0x28] sm:$0xff] %v528
      %561 = vst [vmem:[#allocation9 + $0x30] sm:$0xff] %v531
      %562 = vst [vmem:[#allocation9 + $0x38] sm:$0xff] %v533
      %563 = vst [vmem:[#allocation9 + $0x40] sm:$0xff] %v536
      %564 = vst [vmem:[#allocation9 + $0x48] sm:$0xff] %v538
      %565 = vst [vmem:[#allocation9 + $0x50] sm:$0xff] %v541
      %566 = vst [vmem:[#allocation9 + $0x58] sm:$0xff] %v543
      %567 = vst [vmem:[#allocation9 + $0x60] sm:$0xff] %v546
      %568 = vst [vmem:[#allocation9 + $0x68] sm:$0xff] %v548
      %569 = vst [vmem:[#allocation9 + $0x70] sm:$0xff] %v551
      %570 = vst [vmem:[#allocation9 + $0x78] sm:$0xff] %v553
    $region33: #{tpu_custom_call.1} parent=1 // pred_fallthru
      _
    // Predicated region
    $region34: #{tpu_custom_call.1} parent=1 // pred_check
      _
    $region35: #{tpu_custom_call.1} parent=1 // pred_check_branch
      %572 = sbr.rel (0) target = $region37
    $region36: #{tpu_custom_call.1} parent=1 // pred_region
      %574 = vsyncadd [#allocation5], 0
      %s575 = sshll.u32 [#allocation9], 4
      %s576 = int_to_ptr.vmem [resolvable:$true] %s575
      %s577 = sshll.u32 %s3, 4
      %s578 = int_to_ptr.hbm [resolvable:$true] %s577
      %583 = dma.vmem_to_hbm [thread:$0]  %s576, 2048, %s578, [#allocation5], 128, 128, 8
    $region37: #{tpu_custom_call.1} parent=1 // pred_fallthru
      _
    // Predicated region
    $region38: #{tpu_custom_call.1} parent=1 // pred_check
      _
    $region39: #{tpu_custom_call.1} parent=1 // pred_check_branch
      %585 = sbr.rel (0) target = $region41
    $region40: #{tpu_custom_call.1} parent=1 // pred_region
      %587 = dma.done [#allocation5], 2048
    $region41: #{tpu_custom_call.1} parent=1 // pred_fallthru
      _
    %588 = vsyncpa [#allocation4], 1
    %589 = vsyncpa [#allocation7], 1
    %590 = vsyncpa [#allocation5], 1

</llo_original>
